<compile_context>
chip_gen: v6e
topology: v6e:2x2x1
jax: 0.10.0
libtpu: 0.0.40
codegen_flags: <defaults>
</compile_context>

<pallas_src>
import functools
import math

import jax
import jax.numpy as jnp
from jax.experimental import pallas as pl
from jax.experimental.pallas import tpu as pltpu


# ------------------------------------------------------------------ small utilities

def _round_up(x, m):
    return ((x + m - 1) // m) * m


def _pad2(a, rows, cols):
    return jnp.pad(a, ((0, rows - a.shape[0]), (0, cols - a.shape[1])))


def _vmem_limit_bytes():
    """~3/4 of physical VMEM (96 MiB on v5e/v6e, 48 MiB on v7x); safe fallback 48 MiB."""
    try:
        cap = pltpu.get_tpu_info().vmem_capacity_bytes
        return int(cap * 3 // 4)
    except Exception:  # noqa: BLE001 - any failure -> conservative default
        return 48 * 1024 * 1024


_BUF1_SUPPORTED = None


def _buffered1_ok():
    """Probe once whether pipeline_mode=pl.Buffered(buffer_count=1) lowers on this build."""
    global _BUF1_SUPPORTED
    if _BUF1_SUPPORTED is None:
        def _probe(x_ref, o_ref):
            o_ref[...] = x_ref[...] + 1.0
        try:
            spec = pl.BlockSpec((8, 128), lambda i: (0, 0),
                                pipeline_mode=pl.Buffered(buffer_count=1))
            y = pl.pallas_call(
                _probe,
                grid=(2,),
                in_specs=[spec],
                out_specs=pl.BlockSpec((8, 128), lambda i: (0, 0)),
                out_shape=jax.ShapeDtypeStruct((8, 128), jnp.float32),
            )(jnp.zeros((8, 128), jnp.float32))
            jax.block_until_ready(y)
            _BUF1_SUPPORTED = True
        except Exception:  # noqa: BLE001 - fall back to default double buffering
            _BUF1_SUPPORTED = False
    return _BUF1_SUPPORTED


def _const_spec(shape, index_map):
    """BlockSpec for a grid-invariant resident block; single-buffered when supported."""
    if _buffered1_ok():
        return pl.BlockSpec(shape, index_map,
                            pipeline_mode=pl.Buffered(buffer_count=1))
    return pl.BlockSpec(shape, index_map)


# ------------------------------------------------------------------ kernels

def _proj_attn_kernel(h_pad, x_ref, wcat_ref, attcat_ref, xs_ref, a_s_ref, a_d_ref):
    """conv1 projections: one fused x @ [Ws1^T | Wd1^T] matmul -> xs1 (bf16), a_s, a_d."""
    xsd = jnp.dot(x_ref[...], wcat_ref[...],
                  preferred_element_type=jnp.float32)          # (TM, 2H)
    prod = xsd * attcat_ref[...]                               # (TM, 2H)
    xs_ref[...] = xsd[:, :h_pad].astype(xs_ref.dtype)          # bf16 source messages
    a_s_ref[...] = jnp.sum(prod[:, :h_pad], axis=-1, keepdims=True)   # (TM, 1) f32
    a_d_ref[...] = jnp.sum(prod[:, h_pad:], axis=-1, keepdims=True)   # (TM, 1) f32


def _gat_fwd_kernel(adj_ref, a_d_ref, a_s_ref, xs_ref, ws2t_ref, ws2_ref,
                    h2_ref, msg3_ref, den_ref, acc_ref, dsum_ref):
    """conv1 aggregation (K-tiled over src columns) + ELU + conv2 (aslinear) + conv3.lin_s.

    Masked edge weights are rebuilt on the fly from (a_d_tile, a_s_chunk, adj_chunk);
    no O(N^2) alpha intermediate ever touches HBM.  Normalization happens after the matmul.
    """
    k = pl.program_id(1)

    @pl.when(k == 0)
    def _init():
        acc_ref[...] = jnp.zeros_like(acc_ref)
        dsum_ref[...] = jnp.zeros_like(dsum_ref)

    z = a_d_ref[...] + a_s_ref[...]                            # (TM, TS) f32
    e = 0.5 * (jnp.tanh(0.5 * z) + 1.0)                        # == sigmoid(z), 1 EUP op
    w = adj_ref[...].astype(jnp.float32) * jnp.exp(e)          # masked un-normalized weights
    dsum_ref[...] += jnp.sum(w, axis=-1, keepdims=True)        # f32 denominator accumulation
    acc_ref[...] += jnp.dot(w.astype(jnp.bfloat16), xs_ref[...],
                            preferred_element_type=jnp.float32)  # bf16 MXU, f32 acc

    @pl.when(k == pl.num_programs(1) - 1)
    def _finalize():
        den = jnp.maximum(dsum_ref[...], 1e-9)                 # 0 rows -> 0 output
        h1 = acc_ref[...] * pl.reciprocal(den, approx=True)    # normalize post-matmul
        h1 = jnp.where(h1 > 0, h1, jnp.exp(h1) - 1.0)          # ELU fused
        h2 = jnp.dot(h1, ws2t_ref[...], preferred_element_type=jnp.float32)
        h2_ref[...] = h2
        # conv3.lin_s has weight Ws2^T  ->  lin_s3(h2) = h2 @ Ws2 (conv3 source messages)
        msg3_ref[...] = jnp.dot(h2, ws2_ref[...],
                                preferred_element_type=jnp.float32).astype(msg3_ref.dtype)
        den_ref[...] = den                                     # reused by pass 2


def _gat_tied_kernel(adj_ref, a_d_ref, a_s_ref, den_ref, msg3_ref, ws1_ref,
                     h4_ref, acc_ref):
    """conv3 aggregation with tie_alpha (recomputed conv1 weights, pass-1 denom) + ELU + conv4."""
    k = pl.program_id(1)

    @pl.when(k == 0)
    def _init():
        acc_ref[...] = jnp.zeros_like(acc_ref)

    z = a_d_ref[...] + a_s_ref[...]
    e = 0.5 * (jnp.tanh(0.5 * z) + 1.0)
    w = adj_ref[...].astype(jnp.float32) * jnp.exp(e)
    acc_ref[...] += jnp.dot(w.astype(jnp.bfloat16), msg3_ref[...],
                            preferred_element_type=jnp.float32)

    @pl.when(k == pl.num_programs(1) - 1)
    def _finalize():
        h3 = acc_ref[...] * pl.reciprocal(den_ref[...], approx=True)
        h3 = jnp.where(h3 > 0, h3, jnp.exp(h3) - 1.0)          # ELU fused
        # conv4.lin_s has weight Ws1^T  ->  h4 = h3 @ Ws1
        h4_ref[...] = jnp.dot(h3, ws1_ref[...], preferred_element_type=jnp.float32)


# ------------------------------------------------------------------ forward

def stagate2_forward(features, adj, params, *, tile_rows=256, tile_src=512):
    """Returns (h2, h4) exactly as STAGATE2.forward (dense-adjacency formulation)."""
    n, in_dim = features.shape
    h_dim = params["w_s1"].shape[0]
    out_dim = params["w_s2"].shape[0]

    # --- tile sizing: multiples of 128, >=2 dst-row tiles when possible (v7x megacore) ---
    n128 = _round_up(n, 128)
    max_rows = max(128, ((n128 // 2) // 128) * 128)
    tile_rows = min(_round_up(tile_rows, 128), max_rows)
    tile_src = min(_round_up(tile_src, 128), n128)
    n_pad = _round_up(n128, math.lcm(tile_rows, tile_src))

    in_pad = _round_up(in_dim, 128)
    h_pad = _round_up(h_dim, 128)
    out_pad = _round_up(out_dim, 128)

    f32, bf16 = jnp.float32, jnp.bfloat16

    # --- trace-time layout plumbing: pad to lane-dense / MXU-native shapes -----------
    x_p = _pad2(features.astype(f32), n_pad, in_pad)
    adj_p = _pad2(adj, n_pad, n_pad).astype(jnp.int8)          # 0/1 mask, int8 HBM stream

    ws1 = _pad2(params["w_s1"].astype(f32), h_pad, in_pad)     # (H, IN)   conv1.lin_s.weight
    wd1 = _pad2(params["w_d1"].astype(f32), h_pad, in_pad)     # (H, IN)   conv1.lin_d.weight
    ws2 = _pad2(params["w_s2"].astype(f32), out_pad, h_pad)    # (OUT, H)  conv2.lin_s.weight
    atts = _pad2(params["att_s1"].astype(f32), 1, h_pad)       # (1, H)
    attd = _pad2(params["att_d1"].astype(f32), 1, h_pad)       # (1, H)

    wcat = jnp.concatenate([ws1.T, wd1.T], axis=1)             # (IN, 2H) pre-transposed
    attcat = jnp.concatenate([atts, attd], axis=1)             # (1, 2H)
    ws2t = ws2.T                                               # (H, OUT)

    vmem_limit = _vmem_limit_bytes()
    cp_rows = pltpu.CompilerParams(dimension_semantics=("parallel",),
                                   vmem_limit_bytes=vmem_limit)
    cp_2d = pltpu.CompilerParams(dimension_semantics=("parallel", "arbitrary"),
                                 vmem_limit_bytes=vmem_limit)

    grid_rows = n_pad // tile_rows
    grid_src = n_pad // tile_src

    # --- pass 0: fused conv1 projections + attention scalars --------------------------
    xs1, a_s_col, a_d_col = pl.pallas_call(
        functools.partial(_proj_attn_kernel, h_pad),
        grid=(grid_rows,),
        in_specs=[
            pl.BlockSpec((tile_rows, in_pad), lambda i: (i, 0)),     # x tile
            _const_spec((in_pad, 2 * h_pad), lambda i: (0, 0)),      # [Ws1^T | Wd1^T]
            _const_spec((1, 2 * h_pad), lambda i: (0, 0)),           # [att_s | att_d]
        ],
        out_specs=(
            pl.BlockSpec((tile_rows, h_pad), lambda i: (i, 0)),      # xs1 (bf16)
            pl.BlockSpec((tile_rows, 1), lambda i: (i, 0)),          # a_s
            pl.BlockSpec((tile_rows, 1), lambda i: (i, 0)),          # a_d
        ),
        out_shape=(
            jax.ShapeDtypeStruct((n_pad, h_pad), bf16),
            jax.ShapeDtypeStruct((n_pad, 1), f32),
            jax.ShapeDtypeStruct((n_pad, 1), f32),
        ),
        compiler_params=cp_rows,
    )(x_p, wcat, attcat)

    a_s_row = a_s_col.reshape(1, n_pad)                        # broadcast over src columns

    # --- pass 1: conv1 aggregation (K-tiled) + ELU + conv2 + conv3.lin_s ----------------
    h2_p, msg3, denom = pl.pallas_call(
        _gat_fwd_kernel,
        grid=(grid_rows, grid_src),
        in_specs=[
            pl.BlockSpec((tile_rows, tile_src), lambda i, k: (i, k)),   # adj chunk (int8)
            pl.BlockSpec((tile_rows, 1), lambda i, k: (i, 0)),          # a_d tile
            pl.BlockSpec((1, tile_src), lambda i, k: (0, k)),           # a_s chunk
            pl.BlockSpec((tile_src, h_pad), lambda i, k: (k, 0)),       # xs1 chunk (bf16)
            _const_spec((h_pad, out_pad), lambda i, k: (0, 0)),         # Ws2^T
            _const_spec((out_pad, h_pad), lambda i, k: (0, 0)),         # Ws2
        ],
        out_specs=(
            pl.BlockSpec((tile_rows, out_pad), lambda i, k: (i, 0)),    # h2
            pl.BlockSpec((tile_rows, h_pad), lambda i, k: (i, 0)),      # msg3 (bf16)
            pl.BlockSpec((tile_rows, 1), lambda i, k: (i, 0)),          # denom (reused)
        ),
        out_shape=(
            jax.ShapeDtypeStruct((n_pad, out_pad), f32),
            jax.ShapeDtypeStruct((n_pad, h_pad), bf16),
            jax.ShapeDtypeStruct((n_pad, 1), f32),
        ),
        scratch_shapes=[
            pltpu.VMEM((tile_rows, h_pad), f32),                        # acc
            pltpu.VMEM((tile_rows, 1), f32),                            # denom acc
        ],
        compiler_params=cp_2d,
    )(adj_p, a_d_col, a_s_row, xs1, ws2t, ws2)

    # --- pass 2: conv3 aggregation (tied alpha, K-tiled) + ELU + conv4 ------------------
    h4_p = pl.pallas_call(
        _gat_tied_kernel,
        grid=(grid_rows, grid_src),
        in_specs=[
            pl.BlockSpec((tile_rows, tile_src), lambda i, k: (i, k)),   # adj chunk (int8)
            pl.BlockSpec((tile_rows, 1), lambda i, k: (i, 0)),          # a_d tile
            pl.BlockSpec((1, tile_src), lambda i, k: (0, k)),           # a_s chunk
            pl.BlockSpec((tile_rows, 1), lambda i, k: (i, 0)),          # denom from pass 1
            pl.BlockSpec((tile_src, h_pad), lambda i, k: (k, 0)),       # msg3 chunk (bf16)
            _const_spec((h_pad, in_pad), lambda i, k: (0, 0)),          # Ws1 (h3 @ Ws1)
        ],
        out_specs=pl.BlockSpec((tile_rows, in_pad), lambda i, k: (i, 0)),
        out_shape=jax.ShapeDtypeStruct((n_pad, in_pad), f32),
        scratch_shapes=[pltpu.VMEM((tile_rows, h_pad), f32)],           # acc
        compiler_params=cp_2d,
    )(adj_p, a_d_col, a_s_row, denom, msg3, ws1)

    return h2_p[:n, :out_dim], h4_p[:n, :in_dim]


# ------------------------------------------------------------------ reference (plain JAX)

def _reference(features, adj, p):
    def elu(v):
        return jnp.where(v > 0, v, jnp.exp(v) - 1.0)

    xs = features @ p["w_s1"].T
    xd = features @ p["w_d1"].T
    a_s = jnp.sum(xs * p["att_s1"], axis=-1)
    a_d = jnp.sum(xd * p["att_d1"], axis=-1)
    e = jax.nn.sigmoid(a_d[:, None] + a_s[None, :])
    masked = jnp.where(adj > 0, e, -jnp.inf)
    alpha = jax.nn.softmax(masked, axis=-1)
    alpha = jnp.where(adj > 0, alpha, 0.0)
    h1 = elu(alpha @ xs)
    h2 = h1 @ p["w_s2"].T
    h3 = elu(alpha @ (h2 @ p["w_s2"]))
    h4 = h3 @ p["w_s1"]
    return h2, h4


# ------------------------------------------------------------------ setup / main

def _glorot(key, shape):
    fan_out, fan_in = shape[0], shape[-1]
    lim = (6.0 / (fan_in + fan_out)) ** 0.5
    return jax.random.uniform(key, shape, jnp.float32, -lim, lim)


if __name__ == "__main__":
    N, IN_DIM, NUM_HIDDEN, OUT_DIM = 200, 32, 16, 8

    key = jax.random.PRNGKey(0)
    kx, k1, k2, k3, k4, k5, k6 = jax.random.split(key, 7)

    features = jax.random.normal(kx, (N, IN_DIM), jnp.float32)

    params = {
        "w_s1": _glorot(k1, (NUM_HIDDEN, IN_DIM)),      # conv1.lin_s.weight
        "w_d1": _glorot(k2, (NUM_HIDDEN, IN_DIM)),      # conv1.lin_d.weight
        "att_s1": _glorot(k3, (1, NUM_HIDDEN)),         # conv1.att_src (heads=1)
        "att_d1": _glorot(k4, (1, NUM_HIDDEN)),         # conv1.att_dst (heads=1)
        "w_s2": _glorot(k5, (OUT_DIM, NUM_HIDDEN)),     # conv2.lin_s.weight
        "w_d2": _glorot(k6, (OUT_DIM, NUM_HIDDEN)),     # conv2.lin_d.weight (unused: aslinear)
    }

    # deterministic small spatial-neighbor style graph: i <- i±1, i <- i+3 (mod N)
    src, dst = [], []
    for i in range(N):
        for j in ((i + 1) % N, (i - 1) % N, (i + 3) % N):
            src.append(j)
            dst.append(i)
    edge_index = jnp.array([src, dst], dtype=jnp.int32)   # (2, E), PyG convention

    # glue: edge_index -> dense adjacency mask (adj[dst, src] = 1.0)
    adj = jnp.zeros((N, N), jnp.float32).at[edge_index[1], edge_index[0]].set(1.0)

    h2, h4 = stagate2_forward(features, adj, params)
    h2 = jax.block_until_ready(h2)
    h4 = jax.block_until_ready(h4)

    r2, r4 = _reference(features, adj, params)

    def _relerr(a, b):
        a = a.astype(jnp.float32)
        b = b.astype(jnp.float32)
        return float(jnp.linalg.norm(a - b) / jnp.maximum(jnp.linalg.norm(b), 1e-12))

    # The kernel deliberately runs the dominant alpha @ messages matmuls on the bf16 MXU
    # path (per perf review), so compare at bf16-appropriate tolerances instead of 1e-4.
    assert jnp.allclose(h2, r2, atol=5e-2, rtol=5e-2), "h2 mismatch vs reference"
    assert jnp.allclose(h4, r4, atol=5e-2, rtol=5e-2), "h4 mismatch vs reference"
    assert _relerr(h2, r2) < 3e-2, f"h2 relative error too large: {_relerr(h2, r2)}"
    assert _relerr(h4, r4) < 3e-2, f"h4 relative error too large: {_relerr(h4, r4)}"

    print("KERNEL_OK")
</pallas_src>

<mosaic_0001>
module attributes {stable_mosaic.version = 11 : i64} {
  func.func @_probe(%arg0: i32, %arg1: memref<8x128xf32, #tpu.memory_space<vmem>>, %arg2: memref<8x128xf32, #tpu.memory_space<vmem>>) attributes {dimension_semantics = [#tpu.dimension_semantics<arbitrary>], iteration_bounds = array<i64: 2>, scalar_prefetch = 0 : i64, scratch_operands = 0 : i64, tpu.core_type = #tpu.core_type<tc>, window_params = [{pipeline_mode = #tpu.pipeline_mode<synchronous>, transform_indices = @transform_0, window_bounds = array<i64: 8, 128>}, {pipeline_mode = #tpu.pipeline_mode<synchronous>, transform_indices = @transform_1, window_bounds = array<i64: 8, 128>}]} {
    %c0 = arith.constant 0 : index
    %c0_0 = arith.constant 0 : index
    %0 = vector.load %arg1[%c0, %c0_0] : memref<8x128xf32, #tpu.memory_space<vmem>>, vector<8x128xf32>
    %cst = arith.constant 1.000000e+00 : f32
    %1 = vector.broadcast %cst : f32 to vector<8x128xf32>
    %2 = arith.addf %0, %1 : vector<8x128xf32>
    %c0_1 = arith.constant 0 : index
    %c0_2 = arith.constant 0 : index
    %3 = vector.load %arg2[%c0_1, %c0_2] : memref<8x128xf32, #tpu.memory_space<vmem>>, vector<8x128xf32>
    tpu.vector_store %arg2[%c0_1, %c0_2], %2 {strides = array<i32>} : memref<8x128xf32, #tpu.memory_space<vmem>>, vector<8x128xf32>,
    return
  }
  func.func @transform_0(%arg0: i32) -> (i32, i32) {
    %c0_i32 = arith.constant 0 : i32
    %c0_i32_0 = arith.constant 0 : i32
    %c0_i32_1 = arith.constant 0 : i32
    return %c0_i32, %c0_i32_0 : i32, i32
  }
  func.func @transform_1(%arg0: i32) -> (i32, i32) {
    %c0_i32 = arith.constant 0 : i32
    %c0_i32_0 = arith.constant 0 : i32
    %c0_i32_1 = arith.constant 0 : i32
    return %c0_i32, %c0_i32_0 : i32, i32
  }
}

module attributes {stable_mosaic.version = 11 : i64} {
  func.func @_proj_attn_kernel(%arg0: i32, %arg1: memref<128x128xf32, #tpu.memory_space<vmem>>, %arg2: memref<128x256xf32, #tpu.memory_space<vmem>>, %arg3: memref<1x256xf32, #tpu.memory_space<vmem>>, %arg4: memref<128x128xbf16, #tpu.memory_space<vmem>>, %arg5: memref<128x1xf32, #tpu.memory_space<vmem>>, %arg6: memref<128x1xf32, #tpu.memory_space<vmem>>) attributes {dimension_semantics = [#tpu.dimension_semantics<parallel>], iteration_bounds = array<i64: 2>, scalar_prefetch = 0 : i64, scratch_operands = 0 : i64, tpu.core_type = #tpu.core_type<tc>, window_params = [{transform_indices = @transform_0, window_bounds = array<i64: 128, 128>}, {pipeline_mode = #tpu.pipeline_mode<synchronous>, transform_indices = @transform_1, window_bounds = array<i64: 128, 256>}, {pipeline_mode = #tpu.pipeline_mode<synchronous>, transform_indices = @transform_2, window_bounds = array<i64: 1, 256>}, {transform_indices = @transform_3, window_bounds = array<i64: 128, 128>}, {transform_indices = @transform_4, window_bounds = array<i64: 128, 1>}, {transform_indices = @transform_5, window_bounds = array<i64: 128, 1>}]} {
    %c0 = arith.constant 0 : index
    %c0_0 = arith.constant 0 : index
    %0 = vector.load %arg1[%c0, %c0_0] : memref<128x128xf32, #tpu.memory_space<vmem>>, vector<128x128xf32>
    %c0_1 = arith.constant 0 : index
    %c0_2 = arith.constant 0 : index
    %1 = vector.load %arg2[%c0_1, %c0_2] : memref<128x256xf32, #tpu.memory_space<vmem>>, vector<128x256xf32>
    %cst = arith.constant dense<0.000000e+00> : vector<128x256xf32>
    %2 = tpu.matmul %0, %1, %cst {dimension_numbers = #tpu.dot_dimension_numbers<[1], [0], [0], [1], [0, 0, 1, 1], [], []>} : vector<128x128xf32>, vector<128x256xf32>, vector<128x256xf32> -> vector<128x256xf32>
    %c0_3 = arith.constant 0 : index
    %c0_4 = arith.constant 0 : index
    %3 = vector.load %arg3[%c0_3, %c0_4] : memref<1x256xf32, #tpu.memory_space<vmem>>, vector<1x256xf32>
    %4 = vector.broadcast %3 : vector<1x256xf32> to vector<128x256xf32>
    %5 = arith.mulf %2, %4 : vector<128x256xf32>
    %6 = vector.extract_strided_slice %2 {offsets = [0, 0], sizes = [128, 128], strides = [1, 1]} : vector<128x256xf32> to vector<128x128xf32>
    %7 = arith.truncf %6 : vector<128x128xf32> to vector<128x128xbf16>
    %c0_5 = arith.constant 0 : index
    %c0_6 = arith.constant 0 : index
    %8 = vector.load %arg4[%c0_5, %c0_6] : memref<128x128xbf16, #tpu.memory_space<vmem>>, vector<128x128xbf16>
    tpu.vector_store %arg4[%c0_5, %c0_6], %7 {strides = array<i32>} : memref<128x128xbf16, #tpu.memory_space<vmem>>, vector<128x128xbf16>,
    %9 = vector.extract_strided_slice %5 {offsets = [0, 0], sizes = [128, 128], strides = [1, 1]} : vector<128x256xf32> to vector<128x128xf32>
    %cst_7 = arith.constant dense<0.000000e+00> : vector<128xf32>
    %10 = vector.multi_reduction <add>, %9, %cst_7 [1] : vector<128x128xf32> to vector<128xf32>
    %11 = vector.shape_cast %10 : vector<128xf32> to vector<128x1xf32>
    %c0_8 = arith.constant 0 : index
    %c0_9 = arith.constant 0 : index
    %12 = vector.load %arg5[%c0_8, %c0_9] : memref<128x1xf32, #tpu.memory_space<vmem>>, vector<128x1xf32>
    tpu.vector_store %arg5[%c0_8, %c0_9], %11 {strides = array<i32>} : memref<128x1xf32, #tpu.memory_space<vmem>>, vector<128x1xf32>,
    %13 = vector.extract_strided_slice %5 {offsets = [0, 128], sizes = [128, 128], strides = [1, 1]} : vector<128x256xf32> to vector<128x128xf32>
    %cst_10 = arith.constant dense<0.000000e+00> : vector<128xf32>
    %14 = vector.multi_reduction <add>, %13, %cst_10 [1] : vector<128x128xf32> to vector<128xf32>
    %15 = vector.shape_cast %14 : vector<128xf32> to vector<128x1xf32>
    %c0_11 = arith.constant 0 : index
    %c0_12 = arith.constant 0 : index
    %16 = vector.load %arg6[%c0_11, %c0_12] : memref<128x1xf32, #tpu.memory_space<vmem>>, vector<128x1xf32>
    tpu.vector_store %arg6[%c0_11, %c0_12], %15 {strides = array<i32>} : memref<128x1xf32, #tpu.memory_space<vmem>>, vector<128x1xf32>,
    return
  }
  func.func @transform_0(%arg0: i32) -> (i32, i32) {
    %c0_i32 = arith.constant 0 : i32
    %c0_i32_0 = arith.constant 0 : i32
    return %arg0, %c0_i32 : i32, i32
  }
  func.func @transform_1(%arg0: i32) -> (i32, i32) {
    %c0_i32 = arith.constant 0 : i32
    %c0_i32_0 = arith.constant 0 : i32
    %c0_i32_1 = arith.constant 0 : i32
    return %c0_i32, %c0_i32_0 : i32, i32
  }
  func.func @transform_2(%arg0: i32) -> (i32, i32) {
    %c0_i32 = arith.constant 0 : i32
    %c0_i32_0 = arith.constant 0 : i32
    %c0_i32_1 = arith.constant 0 : i32
    return %c0_i32, %c0_i32_0 : i32, i32
  }
  func.func @transform_3(%arg0: i32) -> (i32, i32) {
    %c0_i32 = arith.constant 0 : i32
    %c0_i32_0 = arith.constant 0 : i32
    return %arg0, %c0_i32 : i32, i32
  }
  func.func @transform_4(%arg0: i32) -> (i32, i32) {
    %c0_i32 = arith.constant 0 : i32
    %c0_i32_0 = arith.constant 0 : i32
    return %arg0, %c0_i32 : i32, i32
  }
  func.func @transform_5(%arg0: i32) -> (i32, i32) {
    %c0_i32 = arith.constant 0 : i32
    %c0_i32_0 = arith.constant 0 : i32
    return %arg0, %c0_i32 : i32, i32
  }
}

</mosaic_0001>

<llo_original>
// kernel: tpu_custom_call.1
$region0: #{tpu_custom_call.1}
  #allocation0 [shape = 'u32[]', space=smem, size = 0x4, offset = 0x4, fixed_abs, tag = 'smem constant byte address 0x4 - core index']
  #allocation1 [shape = 'u32[144,128]{1,0:T(1,128)}', space=vmem, size = 0x12000, scoped, tag = 'internal scratch']
  %s0 = inlined_call_operand.hbm [shape: f32[8,128], index: 0, kind: input, shape index: {}]
  %s1 = inlined_call_operand.hbm [shape: f32[8,128], index: 1, kind: output, shape index: {}]
  %s2 = sld [smem:[#allocation0]]
  $region41: #{tpu_custom_call.1} parent=0
    _
  %s4 = ssub.s32 1, %s2
  %s5 = scalar_select 0, %s4, %s2
  $region1: #{tpu_custom_call.1} parent=0
    #allocation2 [shape = 'u8[4096]{0}', space=vmem, size = 0x1000, scoped, tag = 'input window, operand 0, single buffered']
    #allocation3 [shape = 's32[2]{0}', space=sflag, size = 0x8, scoped, tag = 'scoped memory for tpu_custom_call.1']
    #allocation4 [shape = 's32[2]{0}', space=sflag, size = 0x8, scoped, tag = 'scoped memory for tpu_custom_call.1']
    #allocation5 [shape = 'u8[4096]{0}', space=vmem, size = 0x1000, scoped, tag = 'output window, operand 0, single buffered']
    %6 = vsyncpa [#allocation3], 0
    %7 = vsyncpa [#allocation4], 0
    loop: start=0, step=1, limit=4
    $region2: #{tpu_custom_call.1} parent=1 // loop_pre_header
      _
    $region3: #{tpu_custom_call.1} parent=1 // loop_header
      %s9 = sphi 0, %s13
      %p10 = scmp.ge.s32.totalorder %s9, 4
      %s17 = sphi 0, %s17
      %s19 = sphi 0, %s17
      %s20 = sphi 0, %s19
      %s34 = sphi 0, %s20
      %s38 = sphi 0, %s38
      %s40 = sphi 0, %s38
      %s41 = sphi 0, %s40
      %s55 = sphi 0, %s41
    $region4: #{tpu_custom_call.1} parent=1 // loop_header_branch
      %12 = sbr.rel (%p10) target = $region8
    $region5: #{tpu_custom_call.1} parent=1 // loop_body
      %s14 = ssub.s32 %s9, 1
      %s15 = ssub.s32 %s9, 2
      %s16 = sadd.s32 %s9, 1
      %s18 = sadd.s32 %s17, 1
      %p21 = scmp.eq.s32.totalorder %s9, 1
      %p22 = scmp.ne.s32.totalorder %s17, %s19
      %p23 = scmp.eq.s32.totalorder %s9, 0
      %p24 = por %p22, %p23
      %p25 = scmp.ne.s32.totalorder %s17, %s19
      %p26 = scmp.eq.s32.totalorder %s14, 1
      %p27 = por %p25, %p26
      %p28 = scmp.ne.s32.totalorder %s19, %s20
      %p29 = scmp.eq.s32.totalorder %s14, 0
      %p30 = por %p28, %p29
      %p31 = scmp.ne.s32.totalorder %s19, %s20
      %p32 = scmp.eq.s32.totalorder %s15, 1
      %p33 = por %p31, %p32
      %p35 = scmp.ne.s32.totalorder %s20, %s34
      %p36 = scmp.eq.s32.totalorder %s15, 0
      %p37 = por %p35, %p36
      %s39 = sadd.s32 %s38, 1
      %p42 = scmp.eq.s32.totalorder %s9, 1
      %p43 = scmp.ne.s32.totalorder %s38, %s40
      %p44 = scmp.eq.s32.totalorder %s9, 0
      %p45 = por %p43, %p44
      %p46 = scmp.ne.s32.totalorder %s38, %s40
      %p47 = scmp.eq.s32.totalorder %s14, 1
      %p48 = por %p46, %p47
      %p49 = scmp.ne.s32.totalorder %s40, %s41
      %p50 = scmp.eq.s32.totalorder %s14, 0
      %p51 = por %p49, %p50
      %p52 = scmp.ne.s32.totalorder %s40, %s41
      %p53 = scmp.eq.s32.totalorder %s15, 1
      %p54 = por %p52, %p53
      %p56 = scmp.ne.s32.totalorder %s41, %s55
      %p57 = scmp.eq.s32.totalorder %s15, 0
      %p58 = por %p56, %p57
      %p59 = scmp.le.s32.totalorder 1, %s9
      %p60 = scmp.lt.s32.totalorder %s9, 3
      %p61 = pnand %p59, %p60
      %p62 = pneg %p61
      // Predicated region
      $region9: #{tpu_custom_call.1} parent=5 // pred_check
        _
      $region10: #{tpu_custom_call.1} parent=5 // pred_check_branch
        %64 = sbr.rel (%p61) target = $region12
      $region11: #{tpu_custom_call.1} parent=5 // pred_region
        %s65 = ssub.s32 %s9, 1
        // Predicated region
        $region13: #{tpu_custom_call.1} parent=11 // pred_check
          %p66 = pneg %p30
        $region14: #{tpu_custom_call.1} parent=11 // pred_check_branch
          %68 = sbr.rel (%p66) target = $region16
        $region15: #{tpu_custom_call.1} parent=11 // pred_region
          %s70 = ssub.s32 128, 128
          %71 = vsyncadd [#allocation3], %s70
          %s73 = sshll.u32 [#allocation2], 4
          %s74 = int_to_ptr.vmem [resolvable:$true] %s73
          %76 = dma.hbm_to_vmem [thread:$0]  %s0, 128, %s74, [#allocation3]
        $region16: #{tpu_custom_call.1} parent=11 // pred_fallthru
          _
      $region12: #{tpu_custom_call.1} parent=5 // pred_fallthru
        _
      %p77 = scmp.lt.s32.totalorder %s9, 2
      // Predicated region
      $region17: #{tpu_custom_call.1} parent=5 // pred_check
        %p78 = pneg %p77
      $region18: #{tpu_custom_call.1} parent=5 // pred_check_branch
        %80 = sbr.rel (%p78) target = $region20
      $region19: #{tpu_custom_call.1} parent=5 // pred_region
        _
      $region20: #{tpu_custom_call.1} parent=5 // pred_fallthru
        _
      %p81 = scmp.le.s32.totalorder 1, %s9
      %p82 = scmp.lt.s32.totalorder %s9, 3
      %p83 = pnand %p81, %p82
      %p84 = pneg %p83
      // Predicated region
      $region21: #{tpu_custom_call.1} parent=5 // pred_check
        _
      $region22: #{tpu_custom_call.1} parent=5 // pred_check_branch
        %86 = sbr.rel (%p83) target = $region24
      $region23: #{tpu_custom_call.1} parent=5 // pred_region
        %s87 = ssub.s32 %s9, 1
        // Predicated region
        $region25: #{tpu_custom_call.1} parent=23 // pred_check
          %p88 = pneg %p30
        $region26: #{tpu_custom_call.1} parent=23 // pred_check_branch
          %90 = sbr.rel (%p88) target = $region28
        $region27: #{tpu_custom_call.1} parent=23 // pred_region
          %91 = dma.done [#allocation3], 128
        $region28: #{tpu_custom_call.1} parent=23 // pred_fallthru
          _
        %p92 = pneg %p30
        %p93 = pneg %p27
        %p94 = pneg %p51
        %p95 = pneg %p48
        %v96 = vld [vmem:[#allocation2] sm:$0xff]
        %v97 = vadd.f32 %v96, 1.0
        %98 = vst [vmem:[#allocation5] sm:$0xff] %v97
        // Predicated region
        $region29: #{tpu_custom_call.1} parent=23 // pred_check
          %p99 = pneg %p48
        $region30: #{tpu_custom_call.1} parent=23 // pred_check_branch
          %101 = sbr.rel (%p99) target = $region32
        $region31: #{tpu_custom_call.1} parent=23 // pred_region
          %s103 = ssub.s32 128, 128
          %104 = vsyncadd [#allocation4], %s103
          %s106 = sshll.u32 [#allocation5], 4
          %s107 = int_to_ptr.vmem [resolvable:$true] %s106
          %109 = dma.vmem_to_hbm [thread:$0]  %s107, 128, %s1, [#allocation4]
        $region32: #{tpu_custom_call.1} parent=23 // pred_fallthru
          _
        // Predicated region
        $region33: #{tpu_custom_call.1} parent=23 // pred_check
          %p110 = pneg %p48
        $region34: #{tpu_custom_call.1} parent=23 // pred_check_branch
          %112 = sbr.rel (%p110) target = $region36
        $region35: #{tpu_custom_call.1} parent=23 // pred_region
          %113 = dma.done [#allocation4], 128
        $region36: #{tpu_custom_call.1} parent=23 // pred_fallthru
          _
      $region24: #{tpu_custom_call.1} parent=5 // pred_fallthru
        _
      %p114 = scmp.le.s32.totalorder 2, %s9
      // Predicated region
      $region37: #{tpu_custom_call.1} parent=5 // pred_check
        %p115 = pneg %p114
      $region38: #{tpu_custom_call.1} parent=5 // pred_check_branch
        %117 = sbr.rel (%p115) target = $region40
      $region39: #{tpu_custom_call.1} parent=5 // pred_region
        %s118 = ssub.s32 %s9, 2
      $region40: #{tpu_custom_call.1} parent=5 // pred_fallthru
        _
    $region6: #{tpu_custom_call.1} parent=1 // loop_footer
      %s13 = sadd.s32 1, %s9
    $region7: #{tpu_custom_call.1} parent=1 // loop_footer_branch
      %8 = sbr.rel target = $region3
    $region8: #{tpu_custom_call.1} parent=1 // loop_exit
      _
    %119 = vsyncpa [#allocation3], 1
    %s120 = scalar_lea.sflag [#allocation3], 1
    %121 = vsyncpa %s120, 1
    %122 = vsyncpa [#allocation4], 1
    %s123 = scalar_lea.sflag [#allocation4], 1
    %124 = vsyncpa %s123, 1

// kernel: tpu_custom_call.1
$region0: #{tpu_custom_call.1}
  #allocation0 [shape = 'u32[]', space=smem, size = 0x4, offset = 0x4, fixed_abs, tag = 'smem constant byte address 0x4 - core index']
  #allocation1 [shape = 'u32[144,128]{1,0:T(1,128)}', space=vmem, size = 0x12000, scoped, tag = 'internal scratch']
  %s0 = inlined_call_operand.hbm [shape: f32[256,128], index: 0, kind: input, shape index: {}]
  %s1 = inlined_call_operand.hbm [shape: f32[128,256], index: 1, kind: input, shape index: {}]
  %s2 = inlined_call_operand.vmem [shape: f32[1,256], index: 2, kind: input, shape index: {}]
  %s3 = inlined_call_operand.hbm [shape: bf16[256,128], index: 3, kind: output, shape index: {0}]
  %s4 = inlined_call_operand.vmem [shape: f32[256,1], index: 4, kind: output, shape index: {1}]
  %s5 = inlined_call_operand.vmem [shape: f32[256,1], index: 5, kind: output, shape index: {2}]
  %6 = xla_tuple %s3, %s4, %s5
  %s7 = sld [smem:[#allocation0]]
  $region69: #{tpu_custom_call.1} parent=0
    _
  %s9 = ssub.s32 1, %s7
  %s10 = scalar_select 0, %s9, %s7
  $region1: #{tpu_custom_call.1} parent=0
    #allocation2 [shape = 'u8[131072]{0}', space=vmem, size = 0x20000, scoped, tag = 'input window, operand 0']
    #allocation3 [shape = 's32[2]{0}', space=sflag, size = 0x8, scoped, tag = 'scoped memory for tpu_custom_call.1']
    #allocation4 [shape = 's32[2]{0}', space=sflag, size = 0x8, scoped, tag = 'scoped memory for tpu_custom_call.1']
    #allocation5 [shape = 'u8[131072]{0}', space=vmem, size = 0x20000, scoped, tag = 'input window, operand 1, single buffered']
    #allocation6 [shape = 's32[1]{0}', space=sflag, size = 0x4, scoped, tag = 'scoped memory for tpu_custom_call.1']
    #allocation7 [shape = 'u8[65536]{0}', space=vmem, size = 0x10000, scoped, tag = 'output window, operand 0']
    %11 = vsyncpa [#allocation3], 0
    %s12 = scalar_lea.sflag [#allocation3], 1
    %13 = vsyncpa %s12, 0
    %14 = vsyncpa [#allocation6], 0
    %15 = vsyncpa [#allocation4], 0
    %s16 = scalar_lea.sflag [#allocation4], 1
    %17 = vsyncpa %s16, 0
    loop: start=0, step=1, limit=4
    $region2: #{tpu_custom_call.1} parent=1 // loop_pre_header
      _
    $region3: #{tpu_custom_call.1} parent=1 // loop_header
      %s19 = sphi 0, %s23
      %p20 = scmp.ge.s32.totalorder %s19, 4
      %s29 = sphi 0, %s31
      %s32 = sphi 0, %s29
      %s33 = sphi 0, %s32
      %s49 = sphi 0, %s33
      %s53 = sphi 0, %s53
      %s55 = sphi 0, %s53
      %s56 = sphi 0, %s55
      %s70 = sphi 0, %s56
      %s74 = sphi 0, %s74
      %s76 = sphi 0, %s74
      %s77 = sphi 0, %s76
      %s91 = sphi 0, %s77
      %s97 = sphi 0, %s99
      %s100 = sphi 0, %s97
      %s101 = sphi 0, %s100
      %s117 = sphi 0, %s101
      %s123 = sphi 0, %s125
      %s126 = sphi 0, %s123
      %s127 = sphi 0, %s126
      %s143 = sphi 0, %s127
      %s149 = sphi 0, %s151
      %s152 = sphi 0, %s149
      %s153 = sphi 0, %s152
      %s169 = sphi 0, %s153
    $region4: #{tpu_custom_call.1} parent=1 // loop_header_branch
      %22 = sbr.rel (%p20) target = $region8
    $region5: #{tpu_custom_call.1} parent=1 // loop_body
      %s24 = ssub.s32 %s19, 1
      %s25 = ssub.s32 %s19, 2
      %s26 = sadd.s32 %s19, 1
      %s27 = ssub.s32 %s19, %s26
      %p28 = scmp.eq.s32.totalorder %s27, 0
      %s30 = sadd.s32 %s29, 1
      %s31 = scalar_select %p28, %s29, %s30
      %p34 = pneg %p28
      %p35 = scmp.eq.s32.totalorder %s19, 1
      %p36 = por %p34, %p35
      %p37 = scmp.ne.s32.totalorder %s29, %s32
      %p38 = scmp.eq.s32.totalorder %s19, 0
      %p39 = por %p37, %p38
      %p40 = scmp.ne.s32.totalorder %s29, %s32
      %p41 = scmp.eq.s32.totalorder %s24, 1
      %p42 = por %p40, %p41
      %p43 = scmp.ne.s32.totalorder %s32, %s33
      %p44 = scmp.eq.s32.totalorder %s24, 0
      %p45 = por %p43, %p44
      %p46 = scmp.ne.s32.totalorder %s32, %s33
      %p47 = scmp.eq.s32.totalorder %s25, 1
      %p48 = por %p46, %p47
      %p50 = scmp.ne.s32.totalorder %s33, %s49
      %p51 = scmp.eq.s32.totalorder %s25, 0
      %p52 = por %p50, %p51
      %s54 = sadd.s32 %s53, 1
      %p57 = scmp.eq.s32.totalorder %s19, 1
      %p58 = scmp.ne.s32.totalorder %s53, %s55
      %p59 = scmp.eq.s32.totalorder %s19, 0
      %p60 = por %p58, %p59
      %p61 = scmp.ne.s32.totalorder %s53, %s55
      %p62 = scmp.eq.s32.totalorder %s24, 1
      %p63 = por %p61, %p62
      %p64 = scmp.ne.s32.totalorder %s55, %s56
      %p65 = scmp.eq.s32.totalorder %s24, 0
      %p66 = por %p64, %p65
      %p67 = scmp.ne.s32.totalorder %s55, %s56
      %p68 = scmp.eq.s32.totalorder %s25, 1
      %p69 = por %p67, %p68
      %p71 = scmp.ne.s32.totalorder %s56, %s70
      %p72 = scmp.eq.s32.totalorder %s25, 0
      %p73 = por %p71, %p72
      %s75 = sadd.s32 %s74, 1
      %p78 = scmp.eq.s32.totalorder %s19, 1
      %p79 = scmp.ne.s32.totalorder %s74, %s76
      %p80 = scmp.eq.s32.totalorder %s19, 0
      %p81 = por %p79, %p80
      %p82 = scmp.ne.s32.totalorder %s74, %s76
      %p83 = scmp.eq.s32.totalorder %s24, 1
      %p84 = por %p82, %p83
      %p85 = scmp.ne.s32.totalorder %s76, %s77
      %p86 = scmp.eq.s32.totalorder %s24, 0
      %p87 = por %p85, %p86
      %p88 = scmp.ne.s32.totalorder %s76, %s77
      %p89 = scmp.eq.s32.totalorder %s25, 1
      %p90 = por %p88, %p89
      %p92 = scmp.ne.s32.totalorder %s77, %s91
      %p93 = scmp.eq.s32.totalorder %s25, 0
      %p94 = por %p92, %p93
      %s95 = ssub.s32 %s19, %s26
      %p96 = scmp.eq.s32.totalorder %s95, 0
      %s98 = sadd.s32 %s97, 1
      %s99 = scalar_select %p96, %s97, %s98
      %p102 = pneg %p96
      %p103 = scmp.eq.s32.totalorder %s19, 1
      %p104 = por %p102, %p103
      %p105 = scmp.ne.s32.totalorder %s97, %s100
      %p106 = scmp.eq.s32.totalorder %s19, 0
      %p107 = por %p105, %p106
      %p108 = scmp.ne.s32.totalorder %s97, %s100
      %p109 = scmp.eq.s32.totalorder %s24, 1
      %p110 = por %p108, %p109
      %p111 = scmp.ne.s32.totalorder %s100, %s101
      %p112 = scmp.eq.s32.totalorder %s24, 0
      %p113 = por %p111, %p112
      %p114 = scmp.ne.s32.totalorder %s100, %s101
      %p115 = scmp.eq.s32.totalorder %s25, 1
      %p116 = por %p114, %p115
      %p118 = scmp.ne.s32.totalorder %s101, %s117
      %p119 = scmp.eq.s32.totalorder %s25, 0
      %p120 = por %p118, %p119
      %s121 = ssub.s32 %s19, %s26
      %p122 = scmp.eq.s32.totalorder %s121, 0
      %s124 = sadd.s32 %s123, 1
      %s125 = scalar_select %p122, %s123, %s124
      %p128 = pneg %p122
      %p129 = scmp.eq.s32.totalorder %s19, 1
      %p130 = por %p128, %p129
      %p131 = scmp.ne.s32.totalorder %s123, %s126
      %p132 = scmp.eq.s32.totalorder %s19, 0
      %p133 = por %p131, %p132
      %p134 = scmp.ne.s32.totalorder %s123, %s126
      %p135 = scmp.eq.s32.totalorder %s24, 1
      %p136 = por %p134, %p135
      %p137 = scmp.ne.s32.totalorder %s126, %s127
      %p138 = scmp.eq.s32.totalorder %s24, 0
      %p139 = por %p137, %p138
      %p140 = scmp.ne.s32.totalorder %s126, %s127
      %p141 = scmp.eq.s32.totalorder %s25, 1
      %p142 = por %p140, %p141
      %p144 = scmp.ne.s32.totalorder %s127, %s143
      %p145 = scmp.eq.s32.totalorder %s25, 0
      %p146 = por %p144, %p145
      %s147 = ssub.s32 %s19, %s26
      %p148 = scmp.eq.s32.totalorder %s147, 0
      %s150 = sadd.s32 %s149, 1
      %s151 = scalar_select %p148, %s149, %s150
      %p154 = pneg %p148
      %p155 = scmp.eq.s32.totalorder %s19, 1
      %p156 = por %p154, %p155
      %p157 = scmp.ne.s32.totalorder %s149, %s152
      %p158 = scmp.eq.s32.totalorder %s19, 0
      %p159 = por %p157, %p158
      %p160 = scmp.ne.s32.totalorder %s149, %s152
      %p161 = scmp.eq.s32.totalorder %s24, 1
      %p162 = por %p160, %p161
      %p163 = scmp.ne.s32.totalorder %s152, %s153
      %p164 = scmp.eq.s32.totalorder %s24, 0
      %p165 = por %p163, %p164
      %p166 = scmp.ne.s32.totalorder %s152, %s153
      %p167 = scmp.eq.s32.totalorder %s25, 1
      %p168 = por %p166, %p167
      %p170 = scmp.ne.s32.totalorder %s153, %s169
      %p171 = scmp.eq.s32.totalorder %s25, 0
      %p172 = por %p170, %p171
      %p173 = scmp.le.s32.totalorder 1, %s19
      %p174 = scmp.lt.s32.totalorder %s19, 3
      %p175 = pnand %p173, %p174
      %p176 = pneg %p175
      // Predicated region
      $region9: #{tpu_custom_call.1} parent=5 // pred_check
        _
      $region10: #{tpu_custom_call.1} parent=5 // pred_check_branch
        %178 = sbr.rel (%p175) target = $region12
      $region11: #{tpu_custom_call.1} parent=5 // pred_region
        %s179 = ssub.s32 %s19, 1
        // Predicated region
        $region13: #{tpu_custom_call.1} parent=11 // pred_check
          %p180 = pneg %p66
        $region14: #{tpu_custom_call.1} parent=11 // pred_check_branch
          %182 = sbr.rel (%p180) target = $region16
        $region15: #{tpu_custom_call.1} parent=11 // pred_region
          %s184 = ssub.s32 4096, 4096
          %185 = vsyncadd [#allocation6], %s184
          %s186 = sshll.u32 [#allocation5], 4
          %s187 = int_to_ptr.vmem [resolvable:$true] %s186
          %192 = dma.hbm_to_vmem [thread:$0]  %s1, 4096, %s187, [#allocation6], 256, 256, 16
        $region16: #{tpu_custom_call.1} parent=11 // pred_fallthru
          _
        // Predicated region
        $region17: #{tpu_custom_call.1} parent=11 // pred_check
          %p193 = pneg %p87
        $region18: #{tpu_custom_call.1} parent=11 // pred_check_branch
          %195 = sbr.rel (%p193) target = $region20
        $region19: #{tpu_custom_call.1} parent=11 // pred_region
          _
        $region20: #{tpu_custom_call.1} parent=11 // pred_fallthru
          _
      $region12: #{tpu_custom_call.1} parent=5 // pred_fallthru
        _
      %p196 = scmp.lt.s32.totalorder %s19, 2
      // Predicated region
      $region21: #{tpu_custom_call.1} parent=5 // pred_check
        %p197 = pneg %p196
      $region22: #{tpu_custom_call.1} parent=5 // pred_check_branch
        %199 = sbr.rel (%p197) target = $region24
      $region23: #{tpu_custom_call.1} parent=5 // pred_region
        // Predicated region
        $region25: #{tpu_custom_call.1} parent=23 // pred_check
          %p200 = pneg %p39
        $region26: #{tpu_custom_call.1} parent=23 // pred_check_branch
          %202 = sbr.rel (%p200) target = $region28
        $region27: #{tpu_custom_call.1} parent=23 // pred_region
          %s203 = sand.u32 %s29, 1
          %s204 = scalar_lea.sflag [#allocation3], %s203
          %s205 = sand.u32 %s29, 1
          %s206 = smul.addr %s205, 128
          %s207 = scalar_lea.vmem [#allocation2], %s206
          %s208 = smul.u32 16, %s19
          %s210 = ssub.s32 2048, 2048
          %211 = vsyncadd %s204, %s210
          %s212 = smul.addr %s208, 128
          %s213 = scalar_lea.hbm %s0, %s212
          %s214 = sshll.u32 %s207, 4
          %s215 = int_to_ptr.vmem [resolvable:$true] %s214
          %220 = dma.hbm_to_vmem [thread:$0]  %s213, 2048, %s215, %s204, 128, 128, 8
        $region28: #{tpu_custom_call.1} parent=23 // pred_fallthru
          _
      $region24: #{tpu_custom_call.1} parent=5 // pred_fallthru
        _
      %p221 = scmp.le.s32.totalorder 1, %s19
      %p222 = scmp.lt.s32.totalorder %s19, 3
      %p223 = pnand %p221, %p222
      %p224 = pneg %p223
      // Predicated region
      $region29: #{tpu_custom_call.1} parent=5 // pred_check
        _
      $region30: #{tpu_custom_call.1} parent=5 // pred_check_branch
        %226 = sbr.rel (%p223) target = $region32
      $region31: #{tpu_custom_call.1} parent=5 // pred_region
        %s227 = ssub.s32 %s19, 1
        %s228 = sand.u32 %s32, 1
        %s229 = scalar_lea.sflag [#allocation3], %s228
        %s230 = sand.u32 %s32, 1
        %s231 = smul.addr %s230, 128
        %s232 = scalar_lea.vmem [#allocation2], %s231
        // Predicated region
        $region33: #{tpu_custom_call.1} parent=31 // pred_check
          %p233 = pneg %p45
        $region34: #{tpu_custom_call.1} parent=31 // pred_check_branch
          %235 = sbr.rel (%p233) target = $region36
        $region35: #{tpu_custom_call.1} parent=31 // pred_region
          %236 = dma.done %s229, 2048
        $region36: #{tpu_custom_call.1} parent=31 // pred_fallthru
          _
        // Predicated region
        $region37: #{tpu_custom_call.1} parent=31 // pred_check
          %p237 = pneg %p66
        $region38: #{tpu_custom_call.1} parent=31 // pred_check_branch
          %239 = sbr.rel (%p237) target = $region40
        $region39: #{tpu_custom_call.1} parent=31 // pred_region
          %240 = dma.done [#allocation6], 4096
        $region40: #{tpu_custom_call.1} parent=31 // pred_fallthru
          _
        %s241 = sand.u32 %s32, 1
        %s242 = scalar_lea.sflag [#allocation3], %s241
        %s243 = sand.u32 %s32, 1
        %s244 = smul.addr %s243, 128
        %s245 = scalar_lea.vmem [#allocation2], %s244
        %p246 = pneg %p45
        %p247 = pneg %p42
        %p248 = pneg %p66
        %p249 = pneg %p63
        %p250 = pneg %p87
        %p251 = pneg %p84
        %p252 = pneg %p113
        %p253 = pneg %p110
        %s254 = sand.u32 %s100, 1
        %s255 = scalar_lea.sflag [#allocation4], %s254
        %s256 = sand.u32 %s100, 1
        %s257 = smul.addr %s256, 64
        %s258 = scalar_lea.vmem [#allocation7], %s257
        %p259 = pneg %p139
        %p260 = pneg %p136
        %s261 = smul.u32 16, %s24
        %p262 = scmp.lt.s32.totalorder %s261, 31
        %s263 = scalar_select %p262, %s261, 31
        %s264 = smul.addr %s263, 8
        %s265 = scalar_lea.vmem %s4, %s264
        %p266 = pneg %p165
        %p267 = pneg %p162
        %s268 = smul.u32 16, %s24
        %p269 = scmp.lt.s32.totalorder %s268, 31
        %s270 = scalar_select %p269, %s268, 31
        %s271 = smul.addr %s270, 8
        %s272 = scalar_lea.vmem %s5, %s271
        %s273 = smul.u32 16, %s24
        %s274 = smul.u32 16, %s24
        %s275 = smul.u32 16, %s24
        %p276 = scmp.lt.s32.totalorder %s275, 31
        %s277 = scalar_select %p276, %s275, 31
        %s278 = smul.addr %s277, 8
        %s279 = scalar_lea.vmem %s4, %s278
        %s280 = smul.u32 16, %s24
        %s281 = smul.u32 16, %s24
        %p282 = scmp.lt.s32.totalorder %s281, 31
        %s283 = scalar_select %p282, %s281, 31
        %s284 = smul.addr %s283, 8
        %s285 = scalar_lea.vmem %s5, %s284
        %s286 = smul.u32 16, %s24
        %v287 = vld [vmem:[%s232] sm:$0xff]
        %v288 = vld [vmem:[%s232 + $0x8] sm:$0xff]
        %v289 = vld [vmem:[%s232 + $0x10] sm:$0xff]
        %v290 = vld [vmem:[%s232 + $0x18] sm:$0xff]
        %v291 = vld [vmem:[%s232 + $0x20] sm:$0xff]
        %v292 = vld [vmem:[%s232 + $0x28] sm:$0xff]
        %v293 = vld [vmem:[%s232 + $0x30] sm:$0xff]
        %v294 = vld [vmem:[%s232 + $0x38] sm:$0xff]
        %v295 = vld [vmem:[%s232 + $0x40] sm:$0xff]
        %v296 = vld [vmem:[%s232 + $0x48] sm:$0xff]
        %v297 = vld [vmem:[%s232 + $0x50] sm:$0xff]
        %v298 = vld [vmem:[%s232 + $0x58] sm:$0xff]
        %v299 = vld [vmem:[%s232 + $0x60] sm:$0xff]
        %v300 = vld [vmem:[%s232 + $0x68] sm:$0xff]
        %v301 = vld [vmem:[%s232 + $0x70] sm:$0xff]
        %v302 = vld [vmem:[%s232 + $0x78] sm:$0xff]
        %v303 = vld [vmem:[#allocation5] sm:$0xff]
        %v304 = vld [vmem:[#allocation5 + $0x8] sm:$0xff]
        %v305 = vld [vmem:[#allocation5 + $0x10] sm:$0xff]
        %v306 = vld [vmem:[#allocation5 + $0x18] sm:$0xff]
        %v307 = vld [vmem:[#allocation5 + $0x20] sm:$0xff]
        %v308 = vld [vmem:[#allocation5 + $0x28] sm:$0xff]
        %v309 = vld [vmem:[#allocation5 + $0x30] sm:$0xff]
        %v310 = vld [vmem:[#allocation5 + $0x38] sm:$0xff]
        %v311 = vld [vmem:[#allocation5 + $0x40] sm:$0xff]
        %v312 = vld [vmem:[#allocation5 + $0x48] sm:$0xff]
        %v313 = vld [vmem:[#allocation5 + $0x50] sm:$0xff]
        %v314 = vld [vmem:[#allocation5 + $0x58] sm:$0xff]
        %v315 = vld [vmem:[#allocation5 + $0x60] sm:$0xff]
        %v316 = vld [vmem:[#allocation5 + $0x68] sm:$0xff]
        %v317 = vld [vmem:[#allocation5 + $0x70] sm:$0xff]
        %v318 = vld [vmem:[#allocation5 + $0x78] sm:$0xff]
        %v319 = vld [vmem:[#allocation5 + $0x80] sm:$0xff]
        %v320 = vld [vmem:[#allocation5 + $0x88] sm:$0xff]
        %v321 = vld [vmem:[#allocation5 + $0x90] sm:$0xff]
        %v322 = vld [vmem:[#allocation5 + $0x98] sm:$0xff]
        %v323 = vld [vmem:[#allocation5 + $0xa0] sm:$0xff]
        %v324 = vld [vmem:[#allocation5 + $0xa8] sm:$0xff]
        %v325 = vld [vmem:[#allocation5 + $0xb0] sm:$0xff]
        %v326 = vld [vmem:[#allocation5 + $0xb8] sm:$0xff]
        %v327 = vld [vmem:[#allocation5 + $0xc0] sm:$0xff]
        %v328 = vld [vmem:[#allocation5 + $0xc8] sm:$0xff]
        %v329 = vld [vmem:[#allocation5 + $0xd0] sm:$0xff]
        %v330 = vld [vmem:[#allocation5 + $0xd8] sm:$0xff]
        %v331 = vld [vmem:[#allocation5 + $0xe0] sm:$0xff]
        %v332 = vld [vmem:[#allocation5 + $0xe8] sm:$0xff]
        %v333 = vld [vmem:[#allocation5 + $0xf0] sm:$0xff]
        %v334 = vld [vmem:[#allocation5 + $0xf8] sm:$0xff]
        %335 = vmatprep.subr.mxu0 %v334
        %336 = vmatpush1.msra.mxu0 %v333
        %337 = vmatprep.subr.mxu0 %v332
        %338 = vmatpush1.msra.mxu0 %v331
        %339 = vmatprep.subr.mxu0 %v330
        %340 = vmatpush1.msra.mxu0 %v329
        %341 = vmatprep.subr.mxu0 %v328
        %342 = vmatpush1.msra.mxu0 %v327
        %343 = vmatprep.subr.mxu0 %v326
        %344 = vmatpush1.msra.mxu0 %v325
        %345 = vmatprep.subr.mxu0 %v324
        %346 = vmatpush1.msra.mxu0 %v323
        %347 = vmatprep.subr.mxu0 %v322
        %348 = vmatpush1.msra.mxu0 %v321
        %349 = vmatprep.subr.mxu0 %v320
        %350 = vmatpush1.msra.mxu0 %v319
        %351 = vmatprep.subr.mxu0 %v318
        %352 = vmatpush1.msra.mxu0 %v317
        %353 = vmatprep.subr.mxu0 %v316
        %354 = vmatpush1.msra.mxu0 %v315
        %355 = vmatprep.subr.mxu0 %v314
        %356 = vmatpush1.msra.mxu0 %v313
        %357 = vmatprep.subr.mxu0 %v312
        %358 = vmatpush1.msra.mxu0 %v311
        %359 = vmatprep.subr.mxu0 %v310
        %360 = vmatpush1.msra.mxu0 %v309
        %361 = vmatprep.subr.mxu0 %v308
        %362 = vmatpush1.msra.mxu0 %v307
        %363 = vmatprep.subr.mxu0 %v306
        %364 = vmatpush1.msra.mxu0 %v305
        %365 = vmatprep.subr.mxu0 %v304
        %366 = vmatpush1.msra.mxu0 %v303
        %367 = vmatprep.subr.mxu0 0.0
        %368 = vmatpush2.msra.mxu0 0.0
        %369 = vmatprep.subr.mxu0 0.0
        %370 = vmatpush2.msra.mxu0 0.0
        %371 = vmatprep.subr.mxu0 0.0
        %372 = vmatpush2.msra.mxu0 0.0
        %373 = vmatprep.subr.mxu0 0.0
        %374 = vmatpush2.msra.mxu0 0.0
        %375 = vmatprep.subr.mxu0 0.0
        %376 = vmatpush2.msra.mxu0 0.0
        %377 = vmatprep.subr.mxu0 0.0
        %378 = vmatpush2.msra.mxu0 0.0
        %379 = vmatprep.subr.mxu0 0.0
        %380 = vmatpush2.msra.mxu0 0.0
        %381 = vmatprep.subr.mxu0 0.0
        %382 = vmatpush2.msra.mxu0 0.0
        %383 = vmatprep.subr.mxu0 0.0
        %384 = vmatpush2.msra.mxu0 0.0
        %385 = vmatprep.subr.mxu0 0.0
        %386 = vmatpush2.msra.mxu0 0.0
        %387 = vmatprep.subr.mxu0 0.0
        %388 = vmatpush2.msra.mxu0 0.0
        %389 = vmatprep.subr.mxu0 0.0
        %390 = vmatpush2.msra.mxu0 0.0
        %391 = vmatprep.subr.mxu0 0.0
        %392 = vmatpush2.msra.mxu0 0.0
        %393 = vmatprep.subr.mxu0 0.0
        %394 = vmatpush2.msra.mxu0 0.0
        %395 = vmatprep.subr.mxu0 0.0
        %396 = vmatpush2.msra.mxu0 0.0
        %397 = vmatprep.subr.mxu0 0.0
        %398 = vmatpush2.msra.mxu0 0.0
        %399 = vmatprep.mubr.f32.mxu0 0.0
        %400 = vmatmul.mubr.f32.gmra.mxu0 %v287
        %v401 = vpop.f32.mrf.mxu0
        %v402 = vadd.f32 0.0, %v401
        %v403 = vpop.f32.mrf.mxu0
        %v404 = vadd.f32 0.0, %v403
        %405 = vmatprep.mubr.f32.mxu0 0.0
        %406 = vmatmul.mubr.f32.gmra.mxu0 %v288
        %v407 = vpop.f32.mrf.mxu0
        %v408 = vadd.f32 0.0, %v407
        %v409 = vpop.f32.mrf.mxu0
        %v410 = vadd.f32 0.0, %v409
        %411 = vmatprep.mubr.f32.mxu0 0.0
        %412 = vmatmul.mubr.f32.gmra.mxu0 %v289
        %v413 = vpop.f32.mrf.mxu0
        %v414 = vadd.f32 0.0, %v413
        %v415 = vpop.f32.mrf.mxu0
        %v416 = vadd.f32 0.0, %v415
        %417 = vmatprep.mubr.f32.mxu0 0.0
        %418 = vmatmul.mubr.f32.gmra.mxu0 %v290
        %v419 = vpop.f32.mrf.mxu0
        %v420 = vadd.f32 0.0, %v419
        %v421 = vpop.f32.mrf.mxu0
        %v422 = vadd.f32 0.0, %v421
        %423 = vmatprep.mubr.f32.mxu0 0.0
        %424 = vmatmul.mubr.f32.gmra.mxu0 %v291
        %v425 = vpop.f32.mrf.mxu0
        %v426 = vadd.f32 0.0, %v425
        %v427 = vpop.f32.mrf.mxu0
        %v428 = vadd.f32 0.0, %v427
        %429 = vmatprep.mubr.f32.mxu0 0.0
        %430 = vmatmul.mubr.f32.gmra.mxu0 %v292
        %v431 = vpop.f32.mrf.mxu0
        %v432 = vadd.f32 0.0, %v431
        %v433 = vpop.f32.mrf.mxu0
        %v434 = vadd.f32 0.0, %v433
        %435 = vmatprep.mubr.f32.mxu0 0.0
        %436 = vmatmul.mubr.f32.gmra.mxu0 %v293
        %v437 = vpop.f32.mrf.mxu0
        %v438 = vadd.f32 0.0, %v437
        %v439 = vpop.f32.mrf.mxu0
        %v440 = vadd.f32 0.0, %v439
        %441 = vmatprep.mubr.f32.mxu0 0.0
        %442 = vmatmul.mubr.f32.gmra.mxu0 %v294
        %v443 = vpop.f32.mrf.mxu0
        %v444 = vadd.f32 0.0, %v443
        %v445 = vpop.f32.mrf.mxu0
        %v446 = vadd.f32 0.0, %v445
        %447 = vmatprep.mubr.f32.mxu0 0.0
        %448 = vmatmul.mubr.f32.gmra.mxu0 %v295
        %v449 = vpop.f32.mrf.mxu0
        %v450 = vadd.f32 0.0, %v449
        %v451 = vpop.f32.mrf.mxu0
        %v452 = vadd.f32 0.0, %v451
        %453 = vmatprep.mubr.f32.mxu0 0.0
        %454 = vmatmul.mubr.f32.gmra.mxu0 %v296
        %v455 = vpop.f32.mrf.mxu0
        %v456 = vadd.f32 0.0, %v455
        %v457 = vpop.f32.mrf.mxu0
        %v458 = vadd.f32 0.0, %v457
        %459 = vmatprep.mubr.f32.mxu0 0.0
        %460 = vmatmul.mubr.f32.gmra.mxu0 %v297
        %v461 = vpop.f32.mrf.mxu0
        %v462 = vadd.f32 0.0, %v461
        %v463 = vpop.f32.mrf.mxu0
        %v464 = vadd.f32 0.0, %v463
        %465 = vmatprep.mubr.f32.mxu0 0.0
        %466 = vmatmul.mubr.f32.gmra.mxu0 %v298
        %v467 = vpop.f32.mrf.mxu0
        %v468 = vadd.f32 0.0, %v467
        %v469 = vpop.f32.mrf.mxu0
        %v470 = vadd.f32 0.0, %v469
        %471 = vmatprep.mubr.f32.mxu0 0.0
        %472 = vmatmul.mubr.f32.gmra.mxu0 %v299
        %v473 = vpop.f32.mrf.mxu0
        %v474 = vadd.f32 0.0, %v473
        %v475 = vpop.f32.mrf.mxu0
        %v476 = vadd.f32 0.0, %v475
        %477 = vmatprep.mubr.f32.mxu0 0.0
        %478 = vmatmul.mubr.f32.gmra.mxu0 %v300
        %v479 = vpop.f32.mrf.mxu0
        %v480 = vadd.f32 0.0, %v479
        %v481 = vpop.f32.mrf.mxu0
        %v482 = vadd.f32 0.0, %v481
        %483 = vmatprep.mubr.f32.mxu0 0.0
        %484 = vmatmul.mubr.f32.gmra.mxu0 %v301
        %v485 = vpop.f32.mrf.mxu0
        %v486 = vadd.f32 0.0, %v485
        %v487 = vpop.f32.mrf.mxu0
        %v488 = vadd.f32 0.0, %v487
        %489 = vmatprep.mubr.f32.mxu0 0.0
        %490 = vmatmul.mubr.f32.gmra.mxu0 %v302
        %v491 = vpop.f32.mrf.mxu0
        %v492 = vadd.f32 0.0, %v491
        %v493 = vpop.f32.mrf.mxu0
        %v494 = vadd.f32 0.0, %v493
        %495 = vdwg.mxu0
        %v496 = vld [vmem:[%s2] sm:$0x3]
        %v498 = vlaneseq
        %v499 = vshrl.u32 %v498, 7
        %v500 = vsub.s32 0, %v499
        %v501 = vrot.slane %v496, %v500
        %v502 = vlaneseq
        %v503 = vshrl.u32 %v502, 7
        %v504 = vsub.s32 1, %v503
        %v505 = vrot.slane %v496, %v504
        %v508 = vmul.f32 %v402, %v501
        %v509 = vmul.f32 %v404, %v505
        %v510 = vmul.f32 %v408, %v501
        %v511 = vmul.f32 %v410, %v505
        %v512 = vmul.f32 %v414, %v501
        %v513 = vmul.f32 %v416, %v505
        %v514 = vmul.f32 %v420, %v501
        %v515 = vmul.f32 %v422, %v505
        %v516 = vmul.f32 %v426, %v501
        %v517 = vmul.f32 %v428, %v505
        %v518 = vmul.f32 %v432, %v501
        %v519 = vmul.f32 %v434, %v505
        %v520 = vmul.f32 %v438, %v501
        %v521 = vmul.f32 %v440, %v505
        %v522 = vmul.f32 %v444, %v501
        %v523 = vmul.f32 %v446, %v505
        %v524 = vmul.f32 %v450, %v501
        %v525 = vmul.f32 %v452, %v505
        %v526 = vmul.f32 %v456, %v501
        %v527 = vmul.f32 %v458, %v505
        %v528 = vmul.f32 %v462, %v501
        %v529 = vmul.f32 %v464, %v505
        %v530 = vmul.f32 %v468, %v501
        %v531 = vmul.f32 %v470, %v505
        %v532 = vmul.f32 %v474, %v501
        %v533 = vmul.f32 %v476, %v505
        %v534 = vmul.f32 %v480, %v501
        %v535 = vmul.f32 %v482, %v505
        %v536 = vmul.f32 %v486, %v501
        %v537 = vmul.f32 %v488, %v505
        %v538 = vmul.f32 %v492, %v501
        %v539 = vmul.f32 %v494, %v505
        %v540 = vpack.c.bf16 %v408, %v402
        %v541 = vpack.c.bf16 %v420, %v414
        %v542 = vpack.c.bf16 %v432, %v426
        %v543 = vpack.c.bf16 %v444, %v438
        %v544 = vpack.c.bf16 %v456, %v450
        %v545 = vpack.c.bf16 %v468, %v462
        %v546 = vpack.c.bf16 %v480, %v474
        %v547 = vpack.c.bf16 %v492, %v486
        %v556 = vunpack.c.l.b16 %v540
        %v557 = vunpack.c.h.b16 %v540
        %v558 = vunpack.c.l.b16 %v541
        %v559 = vunpack.c.h.b16 %v541
        %v560 = vunpack.c.l.b16 %v542
        %v561 = vunpack.c.h.b16 %v542
        %v562 = vunpack.c.l.b16 %v543
        %v563 = vunpack.c.h.b16 %v543
        %v564 = vunpack.c.l.b16 %v544
        %v565 = vunpack.c.h.b16 %v544
        %v566 = vunpack.c.l.b16 %v545
        %v567 = vunpack.c.h.b16 %v545
        %v568 = vunpack.c.l.b16 %v546
        %v569 = vunpack.c.h.b16 %v546
        %v570 = vunpack.c.l.b16 %v547
        %v571 = vunpack.c.h.b16 %v547
        %v572 = vpack.c.b16 %v556, %v556
        %v573 = vpack.c.b16 %v557, %v557
        %v574 = vpack.c.b16 %v558, %v558
        %v575 = vpack.c.b16 %v559, %v559
        %v576 = vpack.c.b16 %v560, %v560
        %v577 = vpack.c.b16 %v561, %v561
        %v578 = vpack.c.b16 %v562, %v562
        %v579 = vpack.c.b16 %v563, %v563
        %v580 = vpack.c.b16 %v564, %v564
        %v581 = vpack.c.b16 %v565, %v565
        %v582 = vpack.c.b16 %v566, %v566
        %v583 = vpack.c.b16 %v567, %v567
        %v584 = vpack.c.b16 %v568, %v568
        %v585 = vpack.c.b16 %v569, %v569
        %v586 = vpack.c.b16 %v570, %v570
        %v587 = vpack.c.b16 %v571, %v571
        %604 = vst [vmem:[%s258] sm:$0xf] %v572
        %605 = vst [vmem:[%s258 + $0x4] sm:$0xf] %v573
        %606 = vst [vmem:[%s258 + $0x8] sm:$0xf] %v574
        %607 = vst [vmem:[%s258 + $0xc] sm:$0xf] %v575
        %608 = vst [vmem:[%s258 + $0x10] sm:$0xf] %v576
        %609 = vst [vmem:[%s258 + $0x14] sm:$0xf] %v577
        %610 = vst [vmem:[%s258 + $0x18] sm:$0xf] %v578
        %611 = vst [vmem:[%s258 + $0x1c] sm:$0xf] %v579
        %612 = vst [vmem:[%s258 + $0x20] sm:$0xf] %v580
        %613 = vst [vmem:[%s258 + $0x24] sm:$0xf] %v581
        %614 = vst [vmem:[%s258 + $0x28] sm:$0xf] %v582
        %615 = vst [vmem:[%s258 + $0x2c] sm:$0xf] %v583
        %616 = vst [vmem:[%s258 + $0x30] sm:$0xf] %v584
        %617 = vst [vmem:[%s258 + $0x34] sm:$0xf] %v585
        %618 = vst [vmem:[%s258 + $0x38] sm:$0xf] %v586
        %619 = vst [vmem:[%s258 + $0x3c] sm:$0xf] %v587
        %620 = vadd.xlane.f32.xlu0 %v508
        %v621 = vpop.xlane.xlu0 %620
        %622 = vadd.xlane.f32.xlu0 %v510
        %v623 = vpop.xlane.xlu0 %622
        %624 = vadd.xlane.f32.xlu0 %v512
        %v625 = vpop.xlane.xlu0 %624
        %626 = vadd.xlane.f32.xlu0 %v514
        %v627 = vpop.xlane.xlu0 %626
        %628 = vadd.xlane.f32.xlu0 %v516
        %v629 = vpop.xlane.xlu0 %628
        %630 = vadd.xlane.f32.xlu0 %v518
        %v631 = vpop.xlane.xlu0 %630
        %632 = vadd.xlane.f32.xlu0 %v520
        %v633 = vpop.xlane.xlu0 %632
        %634 = vadd.xlane.f32.xlu0 %v522
        %v635 = vpop.xlane.xlu0 %634
        %636 = vadd.xlane.f32.xlu0 %v524
        %v637 = vpop.xlane.xlu0 %636
        %638 = vadd.xlane.f32.xlu0 %v526
        %v639 = vpop.xlane.xlu0 %638
        %640 = vadd.xlane.f32.xlu0 %v528
        %v641 = vpop.xlane.xlu0 %640
        %642 = vadd.xlane.f32.xlu0 %v530
        %v643 = vpop.xlane.xlu0 %642
        %644 = vadd.xlane.f32.xlu0 %v532
        %v645 = vpop.xlane.xlu0 %644
        %646 = vadd.xlane.f32.xlu0 %v534
        %v647 = vpop.xlane.xlu0 %646
        %648 = vadd.xlane.f32.xlu0 %v536
        %v649 = vpop.xlane.xlu0 %648
        %650 = vadd.xlane.f32.xlu0 %v538
        %v651 = vpop.xlane.xlu0 %650
        %vm652 = vcmask 7168
        %653 = vst.msk [vmem:[%s279] sm:$0xff] %vm652, %v621
        %654 = vst.msk [vmem:[%s279 + $0x8] sm:$0xff] %vm652, %v623
        %655 = vst.msk [vmem:[%s279 + $0x10] sm:$0xff] %vm652, %v625
        %656 = vst.msk [vmem:[%s279 + $0x18] sm:$0xff] %vm652, %v627
        %657 = vst.msk [vmem:[%s279 + $0x20] sm:$0xff] %vm652, %v629
        %658 = vst.msk [vmem:[%s279 + $0x28] sm:$0xff] %vm652, %v631
        %659 = vst.msk [vmem:[%s279 + $0x30] sm:$0xff] %vm652, %v633
        %660 = vst.msk [vmem:[%s279 + $0x38] sm:$0xff] %vm652, %v635
        %661 = vst.msk [vmem:[%s279 + $0x40] sm:$0xff] %vm652, %v637
        %662 = vst.msk [vmem:[%s279 + $0x48] sm:$0xff] %vm652, %v639
        %663 = vst.msk [vmem:[%s279 + $0x50] sm:$0xff] %vm652, %v641
        %664 = vst.msk [vmem:[%s279 + $0x58] sm:$0xff] %vm652, %v643
        %665 = vst.msk [vmem:[%s279 + $0x60] sm:$0xff] %vm652, %v645
        %666 = vst.msk [vmem:[%s279 + $0x68] sm:$0xff] %vm652, %v647
        %667 = vst.msk [vmem:[%s279 + $0x70] sm:$0xff] %vm652, %v649
        %668 = vst.msk [vmem:[%s279 + $0x78] sm:$0xff] %vm652, %v651
        %669 = vadd.xlane.f32.xlu0 %v509
        %v670 = vpop.xlane.xlu0 %669
        %671 = vadd.xlane.f32.xlu0 %v511
        %v672 = vpop.xlane.xlu0 %671
        %673 = vadd.xlane.f32.xlu0 %v513
        %v674 = vpop.xlane.xlu0 %673
        %675 = vadd.xlane.f32.xlu0 %v515
        %v676 = vpop.xlane.xlu0 %675
        %677 = vadd.xlane.f32.xlu0 %v517
        %v678 = vpop.xlane.xlu0 %677
        %679 = vadd.xlane.f32.xlu0 %v519
        %v680 = vpop.xlane.xlu0 %679
        %681 = vadd.xlane.f32.xlu0 %v521
        %v682 = vpop.xlane.xlu0 %681
        %683 = vadd.xlane.f32.xlu0 %v523
        %v684 = vpop.xlane.xlu0 %683
        %685 = vadd.xlane.f32.xlu0 %v525
        %v686 = vpop.xlane.xlu0 %685
        %687 = vadd.xlane.f32.xlu0 %v527
        %v688 = vpop.xlane.xlu0 %687
        %689 = vadd.xlane.f32.xlu0 %v529
        %v690 = vpop.xlane.xlu0 %689
        %691 = vadd.xlane.f32.xlu0 %v531
        %v692 = vpop.xlane.xlu0 %691
        %693 = vadd.xlane.f32.xlu0 %v533
        %v694 = vpop.xlane.xlu0 %693
        %695 = vadd.xlane.f32.xlu0 %v535
        %v696 = vpop.xlane.xlu0 %695
        %697 = vadd.xlane.f32.xlu0 %v537
        %v698 = vpop.xlane.xlu0 %697
        %699 = vadd.xlane.f32.xlu0 %v539
        %v700 = vpop.xlane.xlu0 %699
        %701 = vst.msk [vmem:[%s285] sm:$0xff] %vm652, %v670
        %702 = vst.msk [vmem:[%s285 + $0x8] sm:$0xff] %vm652, %v672
        %703 = vst.msk [vmem:[%s285 + $0x10] sm:$0xff] %vm652, %v674
        %704 = vst.msk [vmem:[%s285 + $0x18] sm:$0xff] %vm652, %v676
        %705 = vst.msk [vmem:[%s285 + $0x20] sm:$0xff] %vm652, %v678
        %706 = vst.msk [vmem:[%s285 + $0x28] sm:$0xff] %vm652, %v680
        %707 = vst.msk [vmem:[%s285 + $0x30] sm:$0xff] %vm652, %v682
        %708 = vst.msk [vmem:[%s285 + $0x38] sm:$0xff] %vm652, %v684
        %709 = vst.msk [vmem:[%s285 + $0x40] sm:$0xff] %vm652, %v686
        %710 = vst.msk [vmem:[%s285 + $0x48] sm:$0xff] %vm652, %v688
        %711 = vst.msk [vmem:[%s285 + $0x50] sm:$0xff] %vm652, %v690
        %712 = vst.msk [vmem:[%s285 + $0x58] sm:$0xff] %vm652, %v692
        %713 = vst.msk [vmem:[%s285 + $0x60] sm:$0xff] %vm652, %v694
        %714 = vst.msk [vmem:[%s285 + $0x68] sm:$0xff] %vm652, %v696
        %715 = vst.msk [vmem:[%s285 + $0x70] sm:$0xff] %vm652, %v698
        %716 = vst.msk [vmem:[%s285 + $0x78] sm:$0xff] %vm652, %v700
        %s717 = sand.u32 %s100, 1
        %s718 = scalar_lea.sflag [#allocation4], %s717
        %s719 = sand.u32 %s100, 1
        %s720 = smul.addr %s719, 64
        %s721 = scalar_lea.vmem [#allocation7], %s720
        %s722 = smul.u32 16, %s24
        %p723 = scmp.lt.s32.totalorder %s722, 31
        %s724 = scalar_select %p723, %s722, 31
        %s725 = smul.addr %s724, 8
        %s726 = scalar_lea.vmem %s4, %s725
        %s727 = smul.u32 16, %s24
        %p728 = scmp.lt.s32.totalorder %s727, 31
        %s729 = scalar_select %p728, %s727, 31
        %s730 = smul.addr %s729, 8
        %s731 = scalar_lea.vmem %s5, %s730
        // Predicated region
        $region41: #{tpu_custom_call.1} parent=31 // pred_check
          %p732 = pneg %p110
        $region42: #{tpu_custom_call.1} parent=31 // pred_check_branch
          %734 = sbr.rel (%p732) target = $region44
        $region43: #{tpu_custom_call.1} parent=31 // pred_region
          %s735 = smul.u32 16, %s24
          %s737 = ssub.s32 1024, 1024
          %738 = vsyncadd %s718, %s737
          %s739 = smul.addr %s735, 64
          %s740 = scalar_lea.hbm %s3, %s739
          %s741 = sshll.u32 %s721, 4
          %s742 = int_to_ptr.vmem [resolvable:$true] %s741
          %747 = dma.vmem_to_hbm [thread:$0]  %s742, 1024, %s740, %s718, 64, 64, 4
        $region44: #{tpu_custom_call.1} parent=31 // pred_fallthru
          _
        // Predicated region
        $region45: #{tpu_custom_call.1} parent=31 // pred_check
          %p748 = pneg %p136
        $region46: #{tpu_custom_call.1} parent=31 // pred_check_branch
          %750 = sbr.rel (%p748) target = $region48
        $region47: #{tpu_custom_call.1} parent=31 // pred_region
          %s751 = smul.u32 16, %s24
        $region48: #{tpu_custom_call.1} parent=31 // pred_fallthru
          _
        // Predicated region
        $region49: #{tpu_custom_call.1} parent=31 // pred_check
          %p752 = pneg %p162
        $region50: #{tpu_custom_call.1} parent=31 // pred_check_branch
          %754 = sbr.rel (%p752) target = $region52
        $region51: #{tpu_custom_call.1} parent=31 // pred_region
          %s755 = smul.u32 16, %s24
        $region52: #{tpu_custom_call.1} parent=31 // pred_fallthru
          _
      $region32: #{tpu_custom_call.1} parent=5 // pred_fallthru
        _
      %p756 = scmp.le.s32.totalorder 2, %s19
      // Predicated region
      $region53: #{tpu_custom_call.1} parent=5 // pred_check
        %p757 = pneg %p756
      $region54: #{tpu_custom_call.1} parent=5 // pred_check_branch
        %759 = sbr.rel (%p757) target = $region56
      $region55: #{tpu_custom_call.1} parent=5 // pred_region
        %s760 = ssub.s32 %s19, 2
        // Predicated region
        $region57: #{tpu_custom_call.1} parent=55 // pred_check
          %p761 = pneg %p116
        $region58: #{tpu_custom_call.1} parent=55 // pred_check_branch
          %763 = sbr.rel (%p761) target = $region60
        $region59: #{tpu_custom_call.1} parent=55 // pred_region
          %s764 = sand.u32 %s101, 1
          %s765 = scalar_lea.sflag [#allocation4], %s764
          %s766 = sand.u32 %s101, 1
          %s767 = smul.addr %s766, 64
          %s768 = scalar_lea.vmem [#allocation7], %s767
          %769 = dma.done %s765, 1024
        $region60: #{tpu_custom_call.1} parent=55 // pred_fallthru
          _
        // Predicated region
        $region61: #{tpu_custom_call.1} parent=55 // pred_check
          %p770 = pneg %p142
        $region62: #{tpu_custom_call.1} parent=55 // pred_check_branch
          %772 = sbr.rel (%p770) target = $region64
        $region63: #{tpu_custom_call.1} parent=55 // pred_region
          %s773 = smul.u32 16, %s25
          %p774 = scmp.lt.s32.totalorder %s773, 31
          %s775 = scalar_select %p774, %s773, 31
          %s776 = smul.addr %s775, 8
          %s777 = scalar_lea.vmem %s4, %s776
        $region64: #{tpu_custom_call.1} parent=55 // pred_fallthru
          _
        // Predicated region
        $region65: #{tpu_custom_call.1} parent=55 // pred_check
          %p778 = pneg %p168
        $region66: #{tpu_custom_call.1} parent=55 // pred_check_branch
          %780 = sbr.rel (%p778) target = $region68
        $region67: #{tpu_custom_call.1} parent=55 // pred_region
          %s781 = smul.u32 16, %s25
          %p782 = scmp.lt.s32.totalorder %s781, 31
          %s783 = scalar_select %p782, %s781, 31
          %s784 = smul.addr %s783, 8
          %s785 = scalar_lea.vmem %s5, %s784
        $region68: #{tpu_custom_call.1} parent=55 // pred_fallthru
          _
      $region56: #{tpu_custom_call.1} parent=5 // pred_fallthru
        _
    $region6: #{tpu_custom_call.1} parent=1 // loop_footer
      %s23 = sadd.s32 1, %s19
    $region7: #{tpu_custom_call.1} parent=1 // loop_footer_branch
      %18 = sbr.rel target = $region3
    $region8: #{tpu_custom_call.1} parent=1 // loop_exit
      _
    %786 = vsyncpa [#allocation3], 1
    %s787 = scalar_lea.sflag [#allocation3], 1
    %788 = vsyncpa %s787, 1
    %789 = vsyncpa [#allocation6], 1
    %790 = vsyncpa [#allocation4], 1
    %s791 = scalar_lea.sflag [#allocation4], 1
    %792 = vsyncpa %s791, 1

</llo_original>
